<compile_context>
chip_gen: v6e
topology: v6e:2x2x1
jax: 0.10.0
libtpu: 0.0.40
codegen_flags: <defaults>
</compile_context>

<pallas_src>
import functools

import jax
import jax.numpy as jnp
from jax.experimental import pallas as pl
from jax.experimental.pallas import tpu as pltpu


def _attention_kernel(hidden_ref, w_ref, ctx_ref, ctxvec_ref, scores_ref,
                      hp_ref, m_ref, l_ref, *, block_s, seq_s):
    """One (b, s) grid step of the S-tiled online-softmax attention.

    hidden_ref : (tB, H)         decoder hidden state (B tile)
    w_ref      : (H, D)          projection weight, pre-transposed (resident)
    ctx_ref    : (tS, tB, D)     context tile in the NATIVE (S, B, D) layout
    ctxvec_ref : (tB, D)   f32   out: context vector (online-softmax accumulator)
    scores_ref : (tS, tB, 1) f32 out: raw masked scores for this tile
    hp_ref     : (tB, D)   f32   scratch: hidden @ W (computed once per B tile)
    m_ref,l_ref: (1, tB, 1) f32  scratch: running max / running denominator
    """
    s_idx = pl.program_id(1)

    # ---- once per B tile (first S tile): projection + accumulator init ----
    @pl.when(s_idx == 0)
    def _init():
        hp_ref[...] = jnp.dot(hidden_ref[...], w_ref[...],
                              preferred_element_type=jnp.float32)
        m_ref[...] = jnp.full_like(m_ref, -1e30)
        l_ref[...] = jnp.zeros_like(l_ref)
        ctxvec_ref[...] = jnp.zeros_like(ctxvec_ref)

    ctx = ctx_ref[...].astype(jnp.float32)                    # (tS, tB, D)
    hp = hp_ref[...]                                          # (tB, D)  f32

    # scores[s, b] = sum_d ctx[s, b, d] * hp[b, d]
    #   VPU multiply + XLU lane reduce; an M=1 MXU dot here would be
    #   weight-load dominated and force per-batch transposes.
    scores = jnp.sum(ctx * hp[None, :, :], axis=-1, keepdims=True)  # (tS, tB, 1)

    # Mask rows of the last (partial) S tile lying past the true length.
    row = (jax.lax.broadcasted_iota(jnp.int32, scores.shape, 0)
           + s_idx * block_s)
    scores = jnp.where(row < seq_s, scores, -1e30)

    # Raw scores out for this tile (normalized outside; factor-D smaller data).
    scores_ref[...] = scores

    # ---- online softmax over the S axis (stats per batch column) ----------
    m_prev = m_ref[...]                                       # (1, tB, 1)
    m_next = jnp.maximum(m_prev, jnp.max(scores, axis=0, keepdims=True))
    alpha = jnp.exp(m_prev - m_next)                          # (1, tB, 1)
    p = jnp.exp(scores - m_next)                              # (tS, tB, 1)
    l_ref[...] = alpha * l_ref[...] + jnp.sum(p, axis=0, keepdims=True)
    m_ref[...] = m_next

    # ctx_vec[b, d] = alpha[b] * ctx_vec[b, d] + sum_s p[s, b] * ctx[s, b, d]
    ctxvec_ref[...] = alpha[0] * ctxvec_ref[...] + jnp.sum(p * ctx, axis=0)

    # ---- last S tile: exact normalization of the context vector -----------
    @pl.when(s_idx == pl.num_programs(1) - 1)
    def _finalize():
        ctxvec_ref[...] = ctxvec_ref[...] / l_ref[0]          # exact divide


def attention_single(hidden, w_proj, contextvects, *, block_s=None, block_b=None,
                     vmem_limit_bytes=48 * 1024 * 1024):
    """One attention step. Returns (ctx_vec (B, D) f32, attn (B, S) f32)."""
    S, B, D = contextvects.shape
    Bh, H = hidden.shape
    assert Bh == B, (Bh, B)
    assert w_proj.shape == (D, H), (w_proj.shape, (D, H))

    # Tiny (D, H) weight transpose in the wrapper keeps the kernel dot
    # transpose-free; the big contextvects tensor stays in its native layout.
    w_t = jnp.transpose(w_proj, (1, 0))                       # (H, D)

    # --- tile sizes ---------------------------------------------------------
    if block_b is None:
        block_b = B if (B <= 8 or B % 8 != 0) else 8          # (8,128) block rule
    assert B % block_b == 0, (B, block_b)
    n_b = B // block_b

    itemsize = jnp.dtype(contextvects.dtype).itemsize
    if block_s is None:
        # Per-buffer VMEM cost of one S tile: ctx rows (block_b*D*itemsize each)
        # plus the lane-padded raw-score rows (~4 KiB each).  Keep one buffer
        # around ~6 MiB so the double-buffered pipeline stays well inside
        # v7x's 64 MiB physical VMEM and v5e's default scoped budget.
        budget = 6 * 1024 * 1024
        per_row = block_b * D * itemsize + 8 * 128 * 4
        block_s = int(min(S, max(8, budget // per_row)))
        if block_s < S:
            block_s = max(8, (block_s // 8) * 8)
    block_s = int(min(block_s, S))
    n_s = -(-S // block_s)                                    # cdiv
    s_pad = n_s * block_s

    kernel = functools.partial(_attention_kernel, block_s=block_s, seq_s=S)

    ctx_vec, scores = pl.pallas_call(
        kernel,
        grid=(n_b, n_s),
        in_specs=[
            pl.BlockSpec((block_b, H), lambda b, s: (b, 0)),              # hidden
            pl.BlockSpec((H, D), lambda b, s: (0, 0)),                    # W^T
            pl.BlockSpec((block_s, block_b, D), lambda b, s: (s, b, 0)),  # ctx
        ],
        out_specs=(
            pl.BlockSpec((block_b, D), lambda b, s: (b, 0)),              # ctx_vec
            pl.BlockSpec((block_s, block_b, 1), lambda b, s: (s, b, 0)),  # scores
        ),
        out_shape=(
            jax.ShapeDtypeStruct((B, D), jnp.float32),
            jax.ShapeDtypeStruct((s_pad, B, 1), jnp.float32),
        ),
        scratch_shapes=[
            pltpu.VMEM((block_b, D), jnp.float32),        # hidden @ W
            pltpu.VMEM((1, block_b, 1), jnp.float32),     # running max
            pltpu.VMEM((1, block_b, 1), jnp.float32),     # running denominator
        ],
        compiler_params=pltpu.CompilerParams(
            dimension_semantics=("parallel", "arbitrary"),
            vmem_limit_bytes=vmem_limit_bytes,
        ),
    )(hidden, w_t, contextvects)

    # Attention weights: exact softmax over the (S, B) raw scores.  This array
    # is a factor D smaller than contextvects, so normalizing it in XLA is off
    # the HBM-bound critical path and gives exactly-normalized weights.
    attn = jax.nn.softmax(scores[:S, :, 0], axis=0)           # (S, B)
    return ctx_vec, jnp.transpose(attn, (1, 0))               # (B, D), (B, S)


def attention_mechanism(seqlen, hidden, w_proj, contextvects, padding_mask=None):
    """Matches AttentionMechanism.forward: returns (context, attentions)."""
    # TODO(synk): padding_mask path not implemented -- the torch source discards
    # the masked_fill_ result, so only padding_mask=None is reproduced.
    assert padding_mask is None
    S, B, D = contextvects.shape
    ctx_vec, attn = attention_single(hidden, w_proj, contextvects)
    # Every iteration of the torch loop writes identical values; prefer
    # consuming (ctx_vec, attn) directly.  The broadcast below only exists to
    # match the module's (seqlen, ...) return signature and stays lazy until a
    # consumer forces materialization.
    context = jnp.broadcast_to(ctx_vec[None], (seqlen, B, D))
    attentions = jnp.broadcast_to(attn[None], (seqlen, B, S))
    return context, attentions


def _reference(seqlen, hidden, w_proj, contextvects):
    """Pure-JAX reference mirroring the torch forward exactly."""
    hidden_proj = hidden @ w_proj.T                                     # (B, D)
    scores = jnp.sum(contextvects * hidden_proj[None], axis=2)          # (S, B)
    attn = jax.nn.softmax(scores, axis=0)                               # (S, B)
    ctx_vec = jnp.sum(attn[:, :, None] * contextvects, axis=0)          # (B, D)
    context = jnp.broadcast_to(ctx_vec[None], (seqlen,) + ctx_vec.shape)
    attentions = jnp.broadcast_to(attn.T[None], (seqlen,) + attn.T.shape)
    return context, attentions


if __name__ == "__main__":
    # dict_args-equivalent sizes (small)
    hidden_size = 32    # H
    context_dim = 16    # D
    context_size = 8    # S
    batch = 2           # B
    seqlen = 4

    key = jax.random.PRNGKey(0)
    k_h, k_c, k_w = jax.random.split(key, 3)

    hidden = jax.random.normal(k_h, (batch, hidden_size), dtype=jnp.float32)
    contextvects = jax.random.normal(
        k_c, (context_size, batch, context_dim), dtype=jnp.float32)
    # nn.Linear(hidden_size, context_dim, bias=False) weight: (context_dim, hidden_size)
    bound = 1.0 / (hidden_size ** 0.5)
    w_proj = jax.random.uniform(
        k_w, (context_dim, hidden_size), dtype=jnp.float32,
        minval=-bound, maxval=bound)

    context, attentions = attention_mechanism(seqlen, hidden, w_proj, contextvects)
    jax.block_until_ready((context, attentions))

    ref_context, ref_attn = _reference(seqlen, hidden, w_proj, contextvects)
    assert context.shape == (seqlen, batch, context_dim)
    assert attentions.shape == (seqlen, batch, context_size)
    assert jnp.allclose(context, ref_context, atol=1e-5, rtol=1e-5)
    assert jnp.allclose(attentions, ref_attn, atol=1e-5, rtol=1e-5)

    print("KERNEL_OK")
</pallas_src>

<mosaic_0001>
module attributes {stable_mosaic.version = 11 : i64} {
  func.func @_attention_kernel(%arg0: i32, %arg1: i32, %arg2: memref<2x32xf32, #tpu.memory_space<vmem>>, %arg3: memref<32x16xf32, #tpu.memory_space<vmem>>, %arg4: memref<8x2x16xf32, #tpu.memory_space<vmem>>, %arg5: memref<2x16xf32, #tpu.memory_space<vmem>>, %arg6: memref<8x2x1xf32, #tpu.memory_space<vmem>>, %arg7: memref<2x16xf32, #tpu.memory_space<vmem>>, %arg8: memref<1x2x1xf32, #tpu.memory_space<vmem>>, %arg9: memref<1x2x1xf32, #tpu.memory_space<vmem>>) attributes {dimension_semantics = [#tpu.dimension_semantics<parallel>, #tpu.dimension_semantics<arbitrary>], iteration_bounds = array<i64: 1, 1>, scalar_prefetch = 0 : i64, scratch_operands = 3 : i64, tpu.core_type = #tpu.core_type<tc>, window_params = [{transform_indices = @transform_0, window_bounds = array<i64: 2, 32>}, {pipeline_mode = #tpu.pipeline_mode<synchronous>, transform_indices = @transform_1, window_bounds = array<i64: 32, 16>}, {transform_indices = @transform_2, window_bounds = array<i64: 8, 2, 16>}, {transform_indices = @transform_3, window_bounds = array<i64: 2, 16>}, {transform_indices = @transform_4, window_bounds = array<i64: 8, 2, 1>}]} {
    %c0_i32 = arith.constant 0 : i32
    %0 = arith.cmpi eq, %arg1, %c0_i32 : i32
    %1 = arith.extui %0 : i1 to i32
    %c0_i32_0 = arith.constant 0 : i32
    %2 = arith.cmpi ne, %1, %c0_i32_0 : i32
    scf.if %2 {
      %c0_31 = arith.constant 0 : index
      %c0_32 = arith.constant 0 : index
      %47 = vector.load %arg2[%c0_31, %c0_32] : memref<2x32xf32, #tpu.memory_space<vmem>>, vector<2x32xf32>
      %c0_33 = arith.constant 0 : index
      %c0_34 = arith.constant 0 : index
      %48 = vector.load %arg3[%c0_33, %c0_34] : memref<32x16xf32, #tpu.memory_space<vmem>>, vector<32x16xf32>
      %cst_35 = arith.constant dense<0.000000e+00> : vector<2x16xf32>
      %49 = tpu.matmul %47, %48, %cst_35 {dimension_numbers = #tpu.dot_dimension_numbers<[1], [0], [0], [1], [0, 0, 1, 1], [], []>} : vector<2x32xf32>, vector<32x16xf32>, vector<2x16xf32> -> vector<2x16xf32>
      %c0_36 = arith.constant 0 : index
      %c0_37 = arith.constant 0 : index
      %50 = vector.load %arg7[%c0_36, %c0_37] : memref<2x16xf32, #tpu.memory_space<vmem>>, vector<2x16xf32>
      tpu.vector_store %arg7[%c0_36, %c0_37], %49 {strides = array<i32>} : memref<2x16xf32, #tpu.memory_space<vmem>>, vector<2x16xf32>,
      %cst_38 = arith.constant -1.000000e+30 : f32
      %51 = vector.broadcast %cst_38 : f32 to vector<1x2x1xf32>
      %c0_39 = arith.constant 0 : index
      %c0_40 = arith.constant 0 : index
      %c0_41 = arith.constant 0 : index
      %52 = vector.load %arg8[%c0_39, %c0_40, %c0_41] : memref<1x2x1xf32, #tpu.memory_space<vmem>>, vector<1x2x1xf32>
      tpu.vector_store %arg8[%c0_39, %c0_40, %c0_41], %51 {strides = array<i32>} : memref<1x2x1xf32, #tpu.memory_space<vmem>>, vector<1x2x1xf32>,
      %cst_42 = arith.constant 0.000000e+00 : f32
      %53 = vector.broadcast %cst_42 : f32 to vector<1x2x1xf32>
      %c0_43 = arith.constant 0 : index
      %c0_44 = arith.constant 0 : index
      %c0_45 = arith.constant 0 : index
      %54 = vector.load %arg9[%c0_43, %c0_44, %c0_45] : memref<1x2x1xf32, #tpu.memory_space<vmem>>, vector<1x2x1xf32>
      tpu.vector_store %arg9[%c0_43, %c0_44, %c0_45], %53 {strides = array<i32>} : memref<1x2x1xf32, #tpu.memory_space<vmem>>, vector<1x2x1xf32>,
      %cst_46 = arith.constant 0.000000e+00 : f32
      %55 = vector.broadcast %cst_46 : f32 to vector<2x16xf32>
      %c0_47 = arith.constant 0 : index
      %c0_48 = arith.constant 0 : index
      %56 = vector.load %arg5[%c0_47, %c0_48] : memref<2x16xf32, #tpu.memory_space<vmem>>, vector<2x16xf32>
      tpu.vector_store %arg5[%c0_47, %c0_48], %55 {strides = array<i32>} : memref<2x16xf32, #tpu.memory_space<vmem>>, vector<2x16xf32>,
    } else {
    }
    %c0 = arith.constant 0 : index
    %c0_1 = arith.constant 0 : index
    %c0_2 = arith.constant 0 : index
    %3 = vector.load %arg4[%c0, %c0_1, %c0_2] : memref<8x2x16xf32, #tpu.memory_space<vmem>>, vector<8x2x16xf32>
    %c0_3 = arith.constant 0 : index
    %c0_4 = arith.constant 0 : index
    %4 = vector.load %arg7[%c0_3, %c0_4] : memref<2x16xf32, #tpu.memory_space<vmem>>, vector<2x16xf32>
    %5 = vector.shape_cast %4 : vector<2x16xf32> to vector<1x2x16xf32>
    %6 = vector.broadcast %5 : vector<1x2x16xf32> to vector<8x2x16xf32>
    %7 = arith.mulf %3, %6 : vector<8x2x16xf32>
    %cst = arith.constant dense<0.000000e+00> : vector<8x2xf32>
    %8 = vector.multi_reduction <add>, %7, %cst [2] : vector<8x2x16xf32> to vector<8x2xf32>
    %9 = vector.shape_cast %8 : vector<8x2xf32> to vector<8x2x1xf32>
    %10 = tpu.iota {dimensions = array<i32: 0>} : vector<8x2x1xi32>
    %c8_i32 = arith.constant 8 : i32
    %11 = arith.muli %arg1, %c8_i32 : i32
    %12 = vector.broadcast %11 : i32 to vector<8x2x1xi32>
    %13 = arith.addi %10, %12 : vector<8x2x1xi32>
    %c8_i32_5 = arith.constant 8 : i32
    %14 = vector.broadcast %c8_i32_5 : i32 to vector<8x2x1xi32>
    %15 = arith.cmpi slt, %13, %14 : vector<8x2x1xi32>
    %cst_6 = arith.constant -1.000000e+30 : f32
    %16 = vector.broadcast %cst_6 : f32 to vector<8x2x1xf32>
    %17 = arith.select %15, %9, %16 : vector<8x2x1xi1>, vector<8x2x1xf32>
    %c0_7 = arith.constant 0 : index
    %c0_8 = arith.constant 0 : index
    %c0_9 = arith.constant 0 : index
    %18 = vector.load %arg6[%c0_7, %c0_8, %c0_9] : memref<8x2x1xf32, #tpu.memory_space<vmem>>, vector<8x2x1xf32>
    tpu.vector_store %arg6[%c0_7, %c0_8, %c0_9], %17 {strides = array<i32>} : memref<8x2x1xf32, #tpu.memory_space<vmem>>, vector<8x2x1xf32>,
    %c0_10 = arith.constant 0 : index
    %c0_11 = arith.constant 0 : index
    %c0_12 = arith.constant 0 : index
    %19 = vector.load %arg8[%c0_10, %c0_11, %c0_12] : memref<1x2x1xf32, #tpu.memory_space<vmem>>, vector<1x2x1xf32>
    %cst_13 = arith.constant dense<0xFF800000> : vector<2x1xf32>
    %20 = vector.multi_reduction <maximumf>, %17, %cst_13 [0] : vector<8x2x1xf32> to vector<2x1xf32>
    %21 = vector.shape_cast %20 : vector<2x1xf32> to vector<1x2x1xf32>
    %22 = arith.maximumf %19, %21 : vector<1x2x1xf32>
    %23 = arith.subf %19, %22 : vector<1x2x1xf32>
    %24 = math.exp %23 : vector<1x2x1xf32>
    %25 = vector.broadcast %22 : vector<1x2x1xf32> to vector<8x2x1xf32>
    %26 = arith.subf %17, %25 : vector<8x2x1xf32>
    %27 = math.exp %26 : vector<8x2x1xf32>
    %c0_14 = arith.constant 0 : index
    %c0_15 = arith.constant 0 : index
    %c0_16 = arith.constant 0 : index
    %28 = vector.load %arg9[%c0_14, %c0_15, %c0_16] : memref<1x2x1xf32, #tpu.memory_space<vmem>>, vector<1x2x1xf32>
    %29 = arith.mulf %24, %28 : vector<1x2x1xf32>
    %cst_17 = arith.constant dense<0.000000e+00> : vector<2x1xf32>
    %30 = vector.multi_reduction <add>, %27, %cst_17 [0] : vector<8x2x1xf32> to vector<2x1xf32>
    %31 = vector.shape_cast %30 : vector<2x1xf32> to vector<1x2x1xf32>
    %32 = arith.addf %29, %31 : vector<1x2x1xf32>
    %c0_18 = arith.constant 0 : index
    %c0_19 = arith.constant 0 : index
    %c0_20 = arith.constant 0 : index
    %33 = vector.load %arg9[%c0_18, %c0_19, %c0_20] : memref<1x2x1xf32, #tpu.memory_space<vmem>>, vector<1x2x1xf32>
    tpu.vector_store %arg9[%c0_18, %c0_19, %c0_20], %32 {strides = array<i32>} : memref<1x2x1xf32, #tpu.memory_space<vmem>>, vector<1x2x1xf32>,
    %c0_21 = arith.constant 0 : index
    %c0_22 = arith.constant 0 : index
    %c0_23 = arith.constant 0 : index
    %34 = vector.load %arg8[%c0_21, %c0_22, %c0_23] : memref<1x2x1xf32, #tpu.memory_space<vmem>>, vector<1x2x1xf32>
    tpu.vector_store %arg8[%c0_21, %c0_22, %c0_23], %22 {strides = array<i32>} : memref<1x2x1xf32, #tpu.memory_space<vmem>>, vector<1x2x1xf32>,
    %35 = vector.shape_cast %24 : vector<1x2x1xf32> to vector<2x1xf32>
    %c0_24 = arith.constant 0 : index
    %c0_25 = arith.constant 0 : index
    %36 = vector.load %arg5[%c0_24, %c0_25] : memref<2x16xf32, #tpu.memory_space<vmem>>, vector<2x16xf32>
    %37 = vector.broadcast %35 : vector<2x1xf32> to vector<2x16xf32>
    %38 = arith.mulf %37, %36 : vector<2x16xf32>
    %39 = vector.broadcast %27 : vector<8x2x1xf32> to vector<8x2x16xf32>
    %40 = arith.mulf %39, %3 : vector<8x2x16xf32>
    %cst_26 = arith.constant dense<0.000000e+00> : vector<2x16xf32>
    %41 = vector.multi_reduction <add>, %40, %cst_26 [0] : vector<8x2x16xf32> to vector<2x16xf32>
    %42 = arith.addf %38, %41 : vector<2x16xf32>
    %c0_27 = arith.constant 0 : index
    %c0_28 = arith.constant 0 : index
    %43 = vector.load %arg5[%c0_27, %c0_28] : memref<2x16xf32, #tpu.memory_space<vmem>>, vector<2x16xf32>
    tpu.vector_store %arg5[%c0_27, %c0_28], %42 {strides = array<i32>} : memref<2x16xf32, #tpu.memory_space<vmem>>, vector<2x16xf32>,
    %c0_i32_29 = arith.constant 0 : i32
    %44 = arith.cmpi eq, %arg1, %c0_i32_29 : i32
    %45 = arith.extui %44 : i1 to i32
    %c0_i32_30 = arith.constant 0 : i32
    %46 = arith.cmpi ne, %45, %c0_i32_30 : i32
    scf.if %46 {
      %c0_31 = arith.constant 0 : index
      %c0_32 = arith.constant 0 : index
      %47 = vector.load %arg5[%c0_31, %c0_32] : memref<2x16xf32, #tpu.memory_space<vmem>>, vector<2x16xf32>
      %c0_33 = arith.constant 0 : index
      %c0_34 = arith.constant 0 : index
      %c0_35 = arith.constant 0 : index
      %48 = vector.load %arg9[%c0_33, %c0_34, %c0_35] : memref<1x2x1xf32, #tpu.memory_space<vmem>>, vector<1x2x1xf32>
      %49 = vector.shape_cast %48 : vector<1x2x1xf32> to vector<2x1xf32>
      %50 = vector.broadcast %49 : vector<2x1xf32> to vector<2x16xf32>
      %51 = arith.divf %47, %50 : vector<2x16xf32>
      %c0_36 = arith.constant 0 : index
      %c0_37 = arith.constant 0 : index
      %52 = vector.load %arg5[%c0_36, %c0_37] : memref<2x16xf32, #tpu.memory_space<vmem>>, vector<2x16xf32>
      tpu.vector_store %arg5[%c0_36, %c0_37], %51 {strides = array<i32>} : memref<2x16xf32, #tpu.memory_space<vmem>>, vector<2x16xf32>,
    } else {
    }
    return
  }
  func.func @transform_0(%arg0: i32, %arg1: i32) -> (i32, i32) {
    %c0_i32 = arith.constant 0 : i32
    %c0_i32_0 = arith.constant 0 : i32
    return %arg0, %c0_i32 : i32, i32
  }
  func.func @transform_1(%arg0: i32, %arg1: i32) -> (i32, i32) {
    %c0_i32 = arith.constant 0 : i32
    %c0_i32_0 = arith.constant 0 : i32
    %c0_i32_1 = arith.constant 0 : i32
    return %c0_i32, %c0_i32_0 : i32, i32
  }
  func.func @transform_2(%arg0: i32, %arg1: i32) -> (i32, i32, i32) {
    %c0_i32 = arith.constant 0 : i32
    %c0_i32_0 = arith.constant 0 : i32
    return %arg1, %arg0, %c0_i32 : i32, i32, i32
  }
  func.func @transform_3(%arg0: i32, %arg1: i32) -> (i32, i32) {
    %c0_i32 = arith.constant 0 : i32
    %c0_i32_0 = arith.constant 0 : i32
    return %arg0, %c0_i32 : i32, i32
  }
  func.func @transform_4(%arg0: i32, %arg1: i32) -> (i32, i32, i32) {
    %c0_i32 = arith.constant 0 : i32
    %c0_i32_0 = arith.constant 0 : i32
    return %arg1, %arg0, %c0_i32 : i32, i32, i32
  }
}

</mosaic_0001>

<llo_original>
// kernel: tpu_custom_call.1
$region0: #{tpu_custom_call.1}
  #allocation0 [shape = 'u32[]', space=smem, size = 0x4, offset = 0x4, fixed_abs, tag = 'smem constant byte address 0x4 - core index']
  #allocation1 [shape = 'u32[144,128]{1,0:T(1,128)}', space=vmem, size = 0x12000, scoped, tag = 'internal scratch']
  #allocation2 [shape = 'f32[2,16]{1,0:T(2,128)}', space=vmem, size = 0x400, scoped, tag = 'scratch operand']
  #allocation3 [shape = 'f32[1,2,1]{2,1,0:T(2,128)}', space=vmem, size = 0x400, scoped, tag = 'scratch operand']
  #allocation4 [shape = 'f32[1,2,1]{2,1,0:T(2,128)}', space=vmem, size = 0x400, scoped, tag = 'scratch operand']
  %s0 = inlined_call_operand.vmem [shape: f32[2,32], index: 0, kind: input, shape index: {}]
  %s1 = inlined_call_operand.vmem [shape: f32[32,16], index: 1, kind: input, shape index: {}]
  %s2 = inlined_call_operand.vmem [shape: f32[8,2,16], index: 2, kind: input, shape index: {}]
  %s3 = inlined_call_operand.hbm [shape: f32[2,16], index: 3, kind: output, shape index: {0}]
  %s4 = inlined_call_operand.vmem [shape: f32[8,2,1], index: 4, kind: output, shape index: {1}]
  %5 = xla_tuple %s3, %s4
  %s6 = sld [smem:[#allocation0]]
  $region38: #{tpu_custom_call.1} parent=0
    _
  %s8 = ssub.s32 1, %s6
  %s9 = scalar_select 0, %s8, %s6
  $region1: #{tpu_custom_call.1} parent=0
    #allocation5 [shape = 'u8[1024]{0}', space=vmem, size = 0x400, scoped, tag = 'output window, operand 0, single buffered']
    #allocation6 [shape = 's32[1]{0}', space=sflag, size = 0x4, scoped, tag = 'scoped memory for tpu_custom_call.1']
    %10 = vsyncpa [#allocation6], 0
    // Predicated region
    $region2: #{tpu_custom_call.1} parent=1 // pred_check
      _
    $region3: #{tpu_custom_call.1} parent=1 // pred_check_branch
      %12 = sbr.rel (0) target = $region5
    $region4: #{tpu_custom_call.1} parent=1 // pred_region
      _
    $region5: #{tpu_custom_call.1} parent=1 // pred_fallthru
      _
    // Predicated region
    $region6: #{tpu_custom_call.1} parent=1 // pred_check
      _
    $region7: #{tpu_custom_call.1} parent=1 // pred_check_branch
      %14 = sbr.rel (0) target = $region9
    $region8: #{tpu_custom_call.1} parent=1 // pred_region
      _
    $region9: #{tpu_custom_call.1} parent=1 // pred_fallthru
      _
    // Predicated region
    $region10: #{tpu_custom_call.1} parent=1 // pred_check
      _
    $region11: #{tpu_custom_call.1} parent=1 // pred_check_branch
      %16 = sbr.rel (0) target = $region13
    $region12: #{tpu_custom_call.1} parent=1 // pred_region
      _
    $region13: #{tpu_custom_call.1} parent=1 // pred_fallthru
      _
    %p17 = scmp.eq.s32.totalorder 0, 0
    // Predicated region
    $region14: #{tpu_custom_call.1} parent=1 // pred_check
      %p18 = pneg %p17
    $region15: #{tpu_custom_call.1} parent=1 // pred_check_branch
      %20 = sbr.rel (%p18) target = $region17
    $region16: #{tpu_custom_call.1} parent=1 // pred_region
      %v21 = vld [vmem:[%s0] sm:$0x3]
      %v22 = vld [vmem:[%s1] sm:$0xff]
      %v23 = vld [vmem:[%s1 + $0x8] sm:$0xff]
      %v24 = vld [vmem:[%s1 + $0x10] sm:$0xff]
      %v25 = vld [vmem:[%s1 + $0x18] sm:$0xff]
      %vm26 = vcmask 261120
      %v28 = vsel %vm26, %v21, 0
      %30 = vmatprep.subr.mxu0 0.0
      %31 = vmatpush1.msra.mxu0 0.0
      %32 = vmatprep.subr.mxu0 0.0
      %33 = vmatpush1.msra.mxu0 0.0
      %34 = vmatprep.subr.mxu0 0.0
      %35 = vmatpush1.msra.mxu0 0.0
      %36 = vmatprep.subr.mxu0 0.0
      %37 = vmatpush1.msra.mxu0 0.0
      %38 = vmatprep.subr.mxu0 0.0
      %39 = vmatpush1.msra.mxu0 0.0
      %40 = vmatprep.subr.mxu0 0.0
      %41 = vmatpush1.msra.mxu0 0.0
      %42 = vmatprep.subr.mxu0 0.0
      %43 = vmatpush1.msra.mxu0 0.0
      %44 = vmatprep.subr.mxu0 0.0
      %45 = vmatpush1.msra.mxu0 0.0
      %46 = vmatprep.subr.mxu0 0.0
      %47 = vmatpush1.msra.mxu0 0.0
      %48 = vmatprep.subr.mxu0 0.0
      %49 = vmatpush1.msra.mxu0 0.0
      %50 = vmatprep.subr.mxu0 0.0
      %51 = vmatpush1.msra.mxu0 0.0
      %52 = vmatprep.subr.mxu0 0.0
      %53 = vmatpush1.msra.mxu0 0.0
      %54 = vmatprep.subr.mxu0 0.0
      %55 = vmatpush1.msra.mxu0 %v25
      %56 = vmatprep.subr.mxu0 0.0
      %57 = vmatpush1.msra.mxu0 %v24
      %58 = vmatprep.subr.mxu0 0.0
      %59 = vmatpush1.msra.mxu0 %v23
      %60 = vmatprep.subr.mxu0 0.0
      %61 = vmatpush1.msra.mxu0 %v22
      %62 = vmatprep.subr.mxu0 0.0
      %63 = vmatpush2.msra.mxu0 0.0
      %64 = vmatprep.subr.mxu0 0.0
      %65 = vmatpush2.msra.mxu0 0.0
      %66 = vmatprep.subr.mxu0 0.0
      %67 = vmatpush2.msra.mxu0 0.0
      %68 = vmatprep.subr.mxu0 0.0
      %69 = vmatpush2.msra.mxu0 0.0
      %70 = vmatprep.subr.mxu0 0.0
      %71 = vmatpush2.msra.mxu0 0.0
      %72 = vmatprep.subr.mxu0 0.0
      %73 = vmatpush2.msra.mxu0 0.0
      %74 = vmatprep.subr.mxu0 0.0
      %75 = vmatpush2.msra.mxu0 0.0
      %76 = vmatprep.subr.mxu0 0.0
      %77 = vmatpush2.msra.mxu0 0.0
      %78 = vmatprep.subr.mxu0 0.0
      %79 = vmatpush2.msra.mxu0 0.0
      %80 = vmatprep.subr.mxu0 0.0
      %81 = vmatpush2.msra.mxu0 0.0
      %82 = vmatprep.subr.mxu0 0.0
      %83 = vmatpush2.msra.mxu0 0.0
      %84 = vmatprep.subr.mxu0 0.0
      %85 = vmatpush2.msra.mxu0 0.0
      %86 = vmatprep.subr.mxu0 0.0
      %87 = vmatpush2.msra.mxu0 0.0
      %88 = vmatprep.subr.mxu0 0.0
      %89 = vmatpush2.msra.mxu0 0.0
      %90 = vmatprep.subr.mxu0 0.0
      %91 = vmatpush2.msra.mxu0 0.0
      %92 = vmatprep.subr.mxu0 0.0
      %93 = vmatpush2.msra.mxu0 0.0
      %94 = vmatprep.mubr.f32.mxu0 0.0
      %95 = vmatmul.mubr.f32.gmra.mxu0 %v28
      %v96 = vpop.f32.mrf.mxu0
      %v97 = vadd.f32 0.0, %v96
      %v98 = vpop.f32.mrf.mxu0
      %99 = vdwg.mxu0
      %vm100 = vcmask 123904
      %101 = vst.msk [vmem:[#allocation2] sm:$0x3] %vm100, %v97
      %vm102 = vcmask 1024
      %103 = vst.msk [vmem:[#allocation3] sm:$0x3] %vm102, -1e+30
      %104 = vst.msk [vmem:[#allocation4] sm:$0x3] %vm102, 0.0
      %105 = vst.msk [vmem:[#allocation5] sm:$0x3] %vm100, 0.0
    $region17: #{tpu_custom_call.1} parent=1 // pred_fallthru
      _
    %v106 = vld [vmem:[%s2] sm:$0x3]
    %v107 = vld [vmem:[%s2 + $0x2] sm:$0x3]
    %v108 = vld [vmem:[%s2 + $0x4] sm:$0x3]
    %v109 = vld [vmem:[%s2 + $0x6] sm:$0x3]
    %v110 = vld [vmem:[%s2 + $0x8] sm:$0x3]
    %v111 = vld [vmem:[%s2 + $0xa] sm:$0x3]
    %v112 = vld [vmem:[%s2 + $0xc] sm:$0x3]
    %v113 = vld [vmem:[%s2 + $0xe] sm:$0x3]
    %v114 = vld [vmem:[#allocation2] sm:$0x3]
    %v115 = vmul.f32 %v106, %v114
    %v116 = vmul.f32 %v107, %v114
    %v117 = vmul.f32 %v108, %v114
    %v118 = vmul.f32 %v109, %v114
    %v119 = vmul.f32 %v110, %v114
    %v120 = vmul.f32 %v111, %v114
    %v121 = vmul.f32 %v112, %v114
    %v122 = vmul.f32 %v113, %v114
    %vm123 = vcmask 123904
    %v124 = vsel %vm123, %v115, 0.0
    %125 = vadd.xlane.f32.xlu0 %v124
    %v126 = vpop.xlane.xlu0 %125
    %v127 = vsel %vm123, %v116, 0.0
    %128 = vadd.xlane.f32.xlu0 %v127
    %v129 = vpop.xlane.xlu0 %128
    %v130 = vsel %vm123, %v117, 0.0
    %131 = vadd.xlane.f32.xlu0 %v130
    %v132 = vpop.xlane.xlu0 %131
    %v133 = vsel %vm123, %v118, 0.0
    %134 = vadd.xlane.f32.xlu0 %v133
    %v135 = vpop.xlane.xlu0 %134
    %v136 = vsel %vm123, %v119, 0.0
    %137 = vadd.xlane.f32.xlu0 %v136
    %v138 = vpop.xlane.xlu0 %137
    %v139 = vsel %vm123, %v120, 0.0
    %140 = vadd.xlane.f32.xlu0 %v139
    %v141 = vpop.xlane.xlu0 %140
    %v142 = vsel %vm123, %v121, 0.0
    %143 = vadd.xlane.f32.xlu0 %v142
    %v144 = vpop.xlane.xlu0 %143
    %v145 = vsel %vm123, %v122, 0.0
    %146 = vadd.xlane.f32.xlu0 %v145
    %v147 = vpop.xlane.xlu0 %146
    %s148 = smul.u32 0, 8
    %v149 = vstv %s148
    %v150 = vadd.s32 %v149, 1
    %v151 = vadd.s32 %v149, 2
    %v152 = vadd.s32 %v149, 3
    %v153 = vadd.s32 %v149, 4
    %v154 = vadd.s32 %v149, 5
    %v155 = vadd.s32 %v149, 6
    %v156 = vadd.s32 %v149, 7
    %vm157 = vcmp.lt.s32.totalorder %v149, 8
    %vm158 = vcmp.lt.s32.totalorder %v150, 8
    %vm159 = vcmp.lt.s32.totalorder %v151, 8
    %vm160 = vcmp.lt.s32.totalorder %v152, 8
    %vm161 = vcmp.lt.s32.totalorder %v153, 8
    %vm162 = vcmp.lt.s32.totalorder %v154, 8
    %vm163 = vcmp.lt.s32.totalorder %v155, 8
    %vm164 = vcmp.lt.s32.totalorder %v156, 8
    %v165 = vsel %vm157, %v126, -1e+30
    %v166 = vsel %vm158, %v129, -1e+30
    %v167 = vsel %vm159, %v132, -1e+30
    %v168 = vsel %vm160, %v135, -1e+30
    %v169 = vsel %vm161, %v138, -1e+30
    %v170 = vsel %vm162, %v141, -1e+30
    %v171 = vsel %vm163, %v144, -1e+30
    %v172 = vsel %vm164, %v147, -1e+30
    %vm173 = vcmask 1024
    %174 = vst.msk [vmem:[%s4] sm:$0x3] %vm173, %v165
    %175 = vst.msk [vmem:[%s4 + $0x2] sm:$0x3] %vm173, %v166
    %176 = vst.msk [vmem:[%s4 + $0x4] sm:$0x3] %vm173, %v167
    %177 = vst.msk [vmem:[%s4 + $0x6] sm:$0x3] %vm173, %v168
    %178 = vst.msk [vmem:[%s4 + $0x8] sm:$0x3] %vm173, %v169
    %179 = vst.msk [vmem:[%s4 + $0xa] sm:$0x3] %vm173, %v170
    %180 = vst.msk [vmem:[%s4 + $0xc] sm:$0x3] %vm173, %v171
    %181 = vst.msk [vmem:[%s4 + $0xe] sm:$0x3] %vm173, %v172
    %v182 = vld [vmem:[#allocation3] sm:$0x3]
    %vm183 = vcmask 1041408
    %v184 = vsel %vm183, %v165, -inf
    %v185 = vsel %vm183, %v166, -inf
    %v186 = vsel %vm183, %v167, -inf
    %v187 = vsel %vm183, %v168, -inf
    %v188 = vsel %vm183, %v169, -inf
    %v189 = vmax.f32 %v184, %v188
    %v190 = vsel %vm183, %v170, -inf
    %v191 = vmax.f32 %v185, %v190
    %v192 = vsel %vm183, %v171, -inf
    %v193 = vmax.f32 %v186, %v192
    %v194 = vsel %vm183, %v172, -inf
    %v195 = vmax.f32 %v187, %v194
    %v196 = vmax.f32 %v189, %v191
    %v197 = vmax.f32 %v193, %v195
    %v198 = vmax.f32 %v196, %v197
    %v199 = vmax.f32 %v182, %v198
    %v200 = vsub.f32 %v182, %v199
    %v201 = vmul.f32 %v200, 1.442695
    %v202 = vpow.pop %v201
    %v203 = vsub.f32 %v165, %v199
    %v204 = vsub.f32 %v166, %v199
    %v205 = vsub.f32 %v167, %v199
    %v206 = vsub.f32 %v168, %v199
    %v207 = vsub.f32 %v169, %v199
    %v208 = vsub.f32 %v170, %v199
    %v209 = vsub.f32 %v171, %v199
    %v210 = vsub.f32 %v172, %v199
    %v211 = vmul.f32 %v203, 1.442695
    %v212 = vpow.pop %v211
    %v213 = vmul.f32 %v204, 1.442695
    %v214 = vpow.pop %v213
    %v215 = vmul.f32 %v205, 1.442695
    %v216 = vpow.pop %v215
    %v217 = vmul.f32 %v206, 1.442695
    %v218 = vpow.pop %v217
    %v219 = vmul.f32 %v207, 1.442695
    %v220 = vpow.pop %v219
    %v221 = vmul.f32 %v208, 1.442695
    %v222 = vpow.pop %v221
    %v223 = vmul.f32 %v209, 1.442695
    %v224 = vpow.pop %v223
    %v225 = vmul.f32 %v210, 1.442695
    %v226 = vpow.pop %v225
    %v227 = vld [vmem:[#allocation4] sm:$0x3]
    %v228 = vmul.f32 %v202, %v227
    %v229 = vsel %vm173, %v212, 0.0
    %v230 = vsel %vm173, %v214, 0.0
    %v231 = vadd.f32 %v229, %v230
    %v232 = vsel %vm173, %v216, 0.0
    %v233 = vadd.f32 %v231, %v232
    %v234 = vsel %vm173, %v218, 0.0
    %v235 = vadd.f32 %v233, %v234
    %v236 = vsel %vm173, %v220, 0.0
    %v237 = vadd.f32 %v235, %v236
    %v238 = vsel %vm173, %v222, 0.0
    %v239 = vadd.f32 %v237, %v238
    %v240 = vsel %vm173, %v224, 0.0
    %v241 = vadd.f32 %v239, %v240
    %v242 = vsel %vm173, %v226, 0.0
    %v243 = vadd.f32 %v241, %v242
    %v244 = vadd.f32 %v228, %v243
    %245 = vst.msk [vmem:[#allocation4] sm:$0x3] %vm173, %v244
    %246 = vst.msk [vmem:[#allocation3] sm:$0x3] %vm173, %v199
    %v247 = vld [vmem:[#allocation5] sm:$0x3]
    %249 = vset.pattern.permute.xlu0 0
    %250 = vperm.xlu0 %249, %v202
    %v251 = vpop.permute.xlu0 %250
    %v253 = vmul.f32 %v251, %v247
    %255 = vset.pattern.permute.xlu0 0
    %256 = vperm.xlu0 %255, %v212
    %v257 = vpop.permute.xlu0 %256
    %260 = vset.pattern.permute.xlu0 0
    %261 = vperm.xlu0 %260, %v214
    %v262 = vpop.permute.xlu0 %261
    %265 = vset.pattern.permute.xlu0 0
    %266 = vperm.xlu0 %265, %v216
    %v267 = vpop.permute.xlu0 %266
    %270 = vset.pattern.permute.xlu0 0
    %271 = vperm.xlu0 %270, %v218
    %v272 = vpop.permute.xlu0 %271
    %275 = vset.pattern.permute.xlu0 0
    %276 = vperm.xlu0 %275, %v220
    %v277 = vpop.permute.xlu0 %276
    %280 = vset.pattern.permute.xlu0 0
    %281 = vperm.xlu0 %280, %v222
    %v282 = vpop.permute.xlu0 %281
    %285 = vset.pattern.permute.xlu0 0
    %286 = vperm.xlu0 %285, %v224
    %v287 = vpop.permute.xlu0 %286
    %290 = vset.pattern.permute.xlu0 0
    %291 = vperm.xlu0 %290, %v226
    %v292 = vpop.permute.xlu0 %291
    %v294 = vmul.f32 %v257, %v106
    %v295 = vmul.f32 %v262, %v107
    %v296 = vmul.f32 %v267, %v108
    %v297 = vmul.f32 %v272, %v109
    %v298 = vmul.f32 %v277, %v110
    %v299 = vmul.f32 %v282, %v111
    %v300 = vmul.f32 %v287, %v112
    %v301 = vmul.f32 %v292, %v113
    %v302 = vsel %vm123, %v294, 0.0
    %v303 = vsel %vm123, %v295, 0.0
    %v304 = vadd.f32 %v302, %v303
    %v305 = vsel %vm123, %v296, 0.0
    %v306 = vadd.f32 %v304, %v305
    %v307 = vsel %vm123, %v297, 0.0
    %v308 = vadd.f32 %v306, %v307
    %v309 = vsel %vm123, %v298, 0.0
    %v310 = vadd.f32 %v308, %v309
    %v311 = vsel %vm123, %v299, 0.0
    %v312 = vadd.f32 %v310, %v311
    %v313 = vsel %vm123, %v300, 0.0
    %v314 = vadd.f32 %v312, %v313
    %v315 = vsel %vm123, %v301, 0.0
    %v316 = vadd.f32 %v314, %v315
    %v317 = vadd.f32 %v253, %v316
    %318 = vst.msk [vmem:[#allocation5] sm:$0x3] %vm123, %v317
    // Predicated region
    $region18: #{tpu_custom_call.1} parent=1 // pred_check
      %p319 = pneg %p17
    $region19: #{tpu_custom_call.1} parent=1 // pred_check_branch
      %321 = sbr.rel (%p319) target = $region21
    $region20: #{tpu_custom_call.1} parent=1 // pred_region
      %v322 = vld [vmem:[#allocation5] sm:$0x3]
      %v323 = vld [vmem:[#allocation4] sm:$0x3]
      %325 = vset.pattern.permute.xlu0 0
      %326 = vperm.xlu0 %325, %v323
      %v327 = vpop.permute.xlu0 %326
      %v329 = vrcp.pop %v327
      %v330 = vmul.f32 %v322, %v329
      %331 = vst.msk [vmem:[#allocation5] sm:$0x3] %vm123, %v330
    $region21: #{tpu_custom_call.1} parent=1 // pred_fallthru
      _
    // Predicated region
    $region22: #{tpu_custom_call.1} parent=1 // pred_check
      _
    $region23: #{tpu_custom_call.1} parent=1 // pred_check_branch
      %333 = sbr.rel (0) target = $region25
    $region24: #{tpu_custom_call.1} parent=1 // pred_region
      %s335 = ssub.s32 32, 32
      %336 = vsyncadd [#allocation6], %s335
      %s338 = sshll.u32 [#allocation5], 4
      %s339 = int_to_ptr.vmem [resolvable:$true] %s338
      %341 = dma.vmem_to_hbm [thread:$0]  %s339, 32, %s3, [#allocation6]
    $region25: #{tpu_custom_call.1} parent=1 // pred_fallthru
      _
    // Predicated region
    $region26: #{tpu_custom_call.1} parent=1 // pred_check
      _
    $region27: #{tpu_custom_call.1} parent=1 // pred_check_branch
      %343 = sbr.rel (0) target = $region29
    $region28: #{tpu_custom_call.1} parent=1 // pred_region
      _
    $region29: #{tpu_custom_call.1} parent=1 // pred_fallthru
      _
    // Predicated region
    $region30: #{tpu_custom_call.1} parent=1 // pred_check
      _
    $region31: #{tpu_custom_call.1} parent=1 // pred_check_branch
      %345 = sbr.rel (0) target = $region33
    $region32: #{tpu_custom_call.1} parent=1 // pred_region
      %346 = dma.done [#allocation6], 32
    $region33: #{tpu_custom_call.1} parent=1 // pred_fallthru
      _
    // Predicated region
    $region34: #{tpu_custom_call.1} parent=1 // pred_check
      _
    $region35: #{tpu_custom_call.1} parent=1 // pred_check_branch
      %348 = sbr.rel (0) target = $region37
    $region36: #{tpu_custom_call.1} parent=1 // pred_region
      _
    $region37: #{tpu_custom_call.1} parent=1 // pred_fallthru
      _
    %349 = vsyncpa [#allocation6], 1

</llo_original>
